<compile_context>
chip_gen: v7x
topology: tpu7x:2x2x1
jax: 0.10.0
libtpu: 0.0.40
codegen_flags: <defaults>
</compile_context>

<pallas_src>
import jax
import jax.numpy as jnp
from jax import lax
from jax.experimental import pallas as pl
from jax.experimental.pallas import tpu as pltpu

EPS = 1e-5


def _partial_stats_kernel(x_ref, sum_ref, sq_ref):
    """Pass 1: per-batch-block partial sum / sum-of-squares (lane reduce)."""
    j = pl.program_id(1)  # spatial (reduction) axis -- innermost

    @pl.when(j == 0)
    def _init():
        sum_ref[...] = jnp.zeros_like(sum_ref)
        sq_ref[...] = jnp.zeros_like(sq_ref)

    x = x_ref[...].astype(jnp.float32)                    # (n_blk, C, hw_tile)
    s = jnp.sum(x, axis=-1, keepdims=True)                # (n_blk, C, 1)
    q = jnp.sum(x * x, axis=-1, keepdims=True)            # (n_blk, C, 1)
    sum_ref[...] += jnp.sum(s, axis=0, keepdims=True)     # (1, C, 1)
    sq_ref[...] += jnp.sum(q, axis=0, keepdims=True)      # (1, C, 1)


def _norm_kernel(x_ref, scale_ref, shift_ref, o_ref):
    """Pass 2: y = x * scale + shift (per-channel scale/shift)."""
    x = x_ref[...].astype(jnp.float32)                    # (n_blk, C, hw_tile)
    y = x * scale_ref[...] + shift_ref[...]               # (C, 1) broadcasts
    o_ref[...] = y.astype(o_ref.dtype)


def _largest_divisor_leq(n, cap):
    cap = max(1, min(n, cap))
    for d in range(cap, 0, -1):
        if n % d == 0:
            return d
    return 1


def _budgets():
    """(block byte target, scoped-VMEM limit) -- generation aware."""
    vmem_phys = 128 << 20
    try:
        vmem_phys = int(pltpu.get_tpu_info().vmem_capacity_bytes)
    except Exception:
        pass
    target = 4 << 20                       # ~4 MiB blocks: 85%+ HBM roofline
    # Pass 2 holds ~4x block (double-buffered in + out); keep the scoped limit
    # comfortably under physical VMEM: 32 MiB on v7x (64 MiB), 48 MiB v5e/v6e.
    limit = int(min(vmem_phys // 2, 48 << 20))
    return target, limit


def _pick_tiles(n, c, hw_pad, itemsize, target_bytes):
    """Pick (n_blk, hw_tile): lane-dense 128-multiples, ~target_bytes/block."""
    q = hw_pad // 128
    col_cap = max(1, target_bytes // (itemsize * c * 128))
    hw_tile = _largest_divisor_leq(q, col_cap) * 128
    blk_bytes = itemsize * c * hw_tile
    n_blk = _largest_divisor_leq(n, max(1, target_bytes // blk_bytes))
    return n_blk, hw_tile


def seeded_batchnorm2d(x, gamma, beta):
    """x: (N, C, H, W); gamma/beta: (C,). Returns (N, C, H, W), same dtype."""
    n, c, h, w = x.shape
    hw = h * w
    m_total = float(n * hw)

    hw_pad = int(pl.cdiv(hw, 128)) * 128
    x3 = x.reshape(n, c, hw)                 # free reshape, no transpose
    if hw_pad != hw:
        # Zero padding is exact: pads add nothing to sum / sum-of-squares and
        # mean/var still divide by the true element count m_total.
        x3 = jnp.pad(x3, ((0, 0), (0, 0), (0, hw_pad - hw)))

    target_bytes, vmem_limit = _budgets()
    n_blk, hw_tile = _pick_tiles(n, c, hw_pad, x.dtype.itemsize, target_bytes)
    n_i = n // n_blk
    n_j = hw_pad // hw_tile
    grid = (n_i, n_j)

    x_spec = pl.BlockSpec((n_blk, c, hw_tile), lambda i, j: (i, 0, j))
    part_spec = pl.BlockSpec((1, c, 1), lambda i, j: (i, 0, 0))
    vec_spec = pl.BlockSpec((c, 1), lambda i, j: (0, 0))   # resident constants

    xbytes = x3.size * x3.dtype.itemsize

    # ---- pass 1: per-batch-block partial statistics (batch axis parallel) --
    psum, psq = pl.pallas_call(
        _partial_stats_kernel,
        out_shape=(jax.ShapeDtypeStruct((n_i, c, 1), jnp.float32),
                   jax.ShapeDtypeStruct((n_i, c, 1), jnp.float32)),
        grid_spec=pltpu.PrefetchScalarGridSpec(
            num_scalar_prefetch=0,
            grid=grid,
            in_specs=[x_spec],
            out_specs=(part_spec, part_spec),
        ),
        compiler_params=pltpu.CompilerParams(
            dimension_semantics=("parallel", "arbitrary"),
            vmem_limit_bytes=vmem_limit),
        cost_estimate=pl.CostEstimate(
            flops=3 * x3.size, transcendentals=0,
            bytes_accessed=xbytes + 2 * n_i * c * 4),
    )(x3)

    # ---- finalize: tiny (C,)-sized math in plain JAX ------------------------
    total = jnp.sum(psum, axis=0)[:, 0]                    # (C,)
    totsq = jnp.sum(psq, axis=0)[:, 0]                     # (C,)
    mean = total / m_total
    var = jnp.maximum(totsq / m_total - mean * mean, 0.0)  # biased variance
    scale = gamma.astype(jnp.float32) * lax.rsqrt(var + EPS)
    shift = beta.astype(jnp.float32) - mean * scale
    scale2 = scale.reshape(c, 1)
    shift2 = shift.reshape(c, 1)

    # ---- pass 2: normalize (fully parallel; megacore-shards on v7x) --------
    out3 = pl.pallas_call(
        _norm_kernel,
        out_shape=jax.ShapeDtypeStruct((n, c, hw_pad), x.dtype),
        grid_spec=pltpu.PrefetchScalarGridSpec(
            num_scalar_prefetch=0,
            grid=grid,
            in_specs=[x_spec, vec_spec, vec_spec],
            out_specs=x_spec,
        ),
        compiler_params=pltpu.CompilerParams(
            dimension_semantics=("parallel", "parallel"),
            vmem_limit_bytes=vmem_limit),
        cost_estimate=pl.CostEstimate(
            flops=2 * x3.size, transcendentals=0,
            bytes_accessed=2 * xbytes),
    )(x3, scale2, shift2)

    if hw_pad != hw:
        out3 = out3[:, :, :hw]
    return out3.reshape(n, c, h, w)


def _reference(x, gamma, beta):
    mean = jnp.mean(x, axis=(0, 2, 3), keepdims=True)
    var = jnp.mean((x - mean) ** 2, axis=(0, 2, 3), keepdims=True)
    return (x - mean) / jnp.sqrt(var + EPS) * gamma.reshape(1, -1, 1, 1) \
        + beta.reshape(1, -1, 1, 1)


if __name__ == "__main__":
    key = jax.random.PRNGKey(0)
    kx, kg, kb = jax.random.split(key, 3)
    N, C, H, W = 2, 4, 16, 16
    x = jax.random.normal(kx, (N, C, H, W), dtype=jnp.float32)
    # nn.BatchNorm2d init is weight=1 / bias=0; use nearby non-trivial values
    # so the affine (scale/shift) path is actually exercised.
    gamma = 1.0 + 0.1 * jax.random.normal(kg, (C,), dtype=jnp.float32)
    beta = 0.1 * jax.random.normal(kb, (C,), dtype=jnp.float32)

    y = seeded_batchnorm2d(x, gamma, beta)
    jax.block_until_ready(y)
    y_ref = _reference(x, gamma, beta)
    assert y.shape == (N, C, H, W)
    err = float(jnp.max(jnp.abs(y - y_ref)))
    assert err < 2e-4, err

    # Non-multiple-of-128 spatial size: exercises the lane-padding path.
    x2 = jax.random.normal(kx, (N, C, 10, 10), dtype=jnp.float32)
    y2 = seeded_batchnorm2d(x2, gamma, beta)
    jax.block_until_ready(y2)
    y2_ref = _reference(x2, gamma, beta)
    assert y2.shape == (N, C, 10, 10)
    err2 = float(jnp.max(jnp.abs(y2 - y2_ref)))
    assert err2 < 2e-4, err2

    print("KERNEL_OK")
</pallas_src>

<mosaic_0001>
module attributes {stable_mosaic.version = 11 : i64} {
  func.func @_partial_stats_kernel(%arg0: i32, %arg1: i32, %arg2: memref<2x4x256xf32, #tpu.memory_space<vmem>>, %arg3: memref<1x4x1xf32, #tpu.memory_space<vmem>>, %arg4: memref<1x4x1xf32, #tpu.memory_space<vmem>>) attributes {dimension_semantics = [#tpu.dimension_semantics<parallel>, #tpu.dimension_semantics<arbitrary>], iteration_bounds = array<i64: 1, 1>, scalar_prefetch = 0 : i64, scratch_operands = 0 : i64, tpu.core_type = #tpu.core_type<tc>, window_params = [{transform_indices = @transform_0, window_bounds = array<i64: 2, 4, 256>}, {transform_indices = @transform_1, window_bounds = array<i64: 1, 4, 1>}, {transform_indices = @transform_2, window_bounds = array<i64: 1, 4, 1>}]} {
    %c0_i32 = arith.constant 0 : i32
    %0 = arith.cmpi eq, %arg1, %c0_i32 : i32
    %1 = arith.extui %0 : i1 to i32
    %c0_i32_0 = arith.constant 0 : i32
    %2 = arith.cmpi ne, %1, %c0_i32_0 : i32
    scf.if %2 {
      %cst_18 = arith.constant 0.000000e+00 : f32
      %19 = vector.broadcast %cst_18 : f32 to vector<1x4x1xf32>
      %c0_19 = arith.constant 0 : index
      %c0_20 = arith.constant 0 : index
      %c0_21 = arith.constant 0 : index
      %20 = vector.load %arg3[%c0_19, %c0_20, %c0_21] : memref<1x4x1xf32, #tpu.memory_space<vmem>>, vector<1x4x1xf32>
      tpu.vector_store %arg3[%c0_19, %c0_20, %c0_21], %19 {strides = array<i32>} : memref<1x4x1xf32, #tpu.memory_space<vmem>>, vector<1x4x1xf32>,
      %cst_22 = arith.constant 0.000000e+00 : f32
      %21 = vector.broadcast %cst_22 : f32 to vector<1x4x1xf32>
      %c0_23 = arith.constant 0 : index
      %c0_24 = arith.constant 0 : index
      %c0_25 = arith.constant 0 : index
      %22 = vector.load %arg4[%c0_23, %c0_24, %c0_25] : memref<1x4x1xf32, #tpu.memory_space<vmem>>, vector<1x4x1xf32>
      tpu.vector_store %arg4[%c0_23, %c0_24, %c0_25], %21 {strides = array<i32>} : memref<1x4x1xf32, #tpu.memory_space<vmem>>, vector<1x4x1xf32>,
    } else {
    }
    %c0 = arith.constant 0 : index
    %c0_1 = arith.constant 0 : index
    %c0_2 = arith.constant 0 : index
    %3 = vector.load %arg2[%c0, %c0_1, %c0_2] : memref<2x4x256xf32, #tpu.memory_space<vmem>>, vector<2x4x256xf32>
    %cst = arith.constant dense<0.000000e+00> : vector<2x4xf32>
    %4 = vector.multi_reduction <add>, %3, %cst [2] : vector<2x4x256xf32> to vector<2x4xf32>
    %5 = vector.shape_cast %4 : vector<2x4xf32> to vector<2x4x1xf32>
    %6 = arith.mulf %3, %3 : vector<2x4x256xf32>
    %cst_3 = arith.constant dense<0.000000e+00> : vector<2x4xf32>
    %7 = vector.multi_reduction <add>, %6, %cst_3 [2] : vector<2x4x256xf32> to vector<2x4xf32>
    %8 = vector.shape_cast %7 : vector<2x4xf32> to vector<2x4x1xf32>
    %c0_4 = arith.constant 0 : index
    %c0_5 = arith.constant 0 : index
    %c0_6 = arith.constant 0 : index
    %9 = vector.load %arg3[%c0_4, %c0_5, %c0_6] : memref<1x4x1xf32, #tpu.memory_space<vmem>>, vector<1x4x1xf32>
    %cst_7 = arith.constant dense<0.000000e+00> : vector<4x1xf32>
    %10 = vector.multi_reduction <add>, %5, %cst_7 [0] : vector<2x4x1xf32> to vector<4x1xf32>
    %11 = vector.shape_cast %10 : vector<4x1xf32> to vector<1x4x1xf32>
    %12 = arith.addf %9, %11 : vector<1x4x1xf32>
    %c0_8 = arith.constant 0 : index
    %c0_9 = arith.constant 0 : index
    %c0_10 = arith.constant 0 : index
    %13 = vector.load %arg3[%c0_8, %c0_9, %c0_10] : memref<1x4x1xf32, #tpu.memory_space<vmem>>, vector<1x4x1xf32>
    tpu.vector_store %arg3[%c0_8, %c0_9, %c0_10], %12 {strides = array<i32>} : memref<1x4x1xf32, #tpu.memory_space<vmem>>, vector<1x4x1xf32>,
    %c0_11 = arith.constant 0 : index
    %c0_12 = arith.constant 0 : index
    %c0_13 = arith.constant 0 : index
    %14 = vector.load %arg4[%c0_11, %c0_12, %c0_13] : memref<1x4x1xf32, #tpu.memory_space<vmem>>, vector<1x4x1xf32>
    %cst_14 = arith.constant dense<0.000000e+00> : vector<4x1xf32>
    %15 = vector.multi_reduction <add>, %8, %cst_14 [0] : vector<2x4x1xf32> to vector<4x1xf32>
    %16 = vector.shape_cast %15 : vector<4x1xf32> to vector<1x4x1xf32>
    %17 = arith.addf %14, %16 : vector<1x4x1xf32>
    %c0_15 = arith.constant 0 : index
    %c0_16 = arith.constant 0 : index
    %c0_17 = arith.constant 0 : index
    %18 = vector.load %arg4[%c0_15, %c0_16, %c0_17] : memref<1x4x1xf32, #tpu.memory_space<vmem>>, vector<1x4x1xf32>
    tpu.vector_store %arg4[%c0_15, %c0_16, %c0_17], %17 {strides = array<i32>} : memref<1x4x1xf32, #tpu.memory_space<vmem>>, vector<1x4x1xf32>,
    return
  }
  func.func @transform_0(%arg0: i32, %arg1: i32) -> (i32, i32, i32) {
    %c0_i32 = arith.constant 0 : i32
    %c0_i32_0 = arith.constant 0 : i32
    return %arg0, %c0_i32, %arg1 : i32, i32, i32
  }
  func.func @transform_1(%arg0: i32, %arg1: i32) -> (i32, i32, i32) {
    %c0_i32 = arith.constant 0 : i32
    %c0_i32_0 = arith.constant 0 : i32
    %c0_i32_1 = arith.constant 0 : i32
    return %arg0, %c0_i32, %c0_i32_0 : i32, i32, i32
  }
  func.func @transform_2(%arg0: i32, %arg1: i32) -> (i32, i32, i32) {
    %c0_i32 = arith.constant 0 : i32
    %c0_i32_0 = arith.constant 0 : i32
    %c0_i32_1 = arith.constant 0 : i32
    return %arg0, %c0_i32, %c0_i32_0 : i32, i32, i32
  }
}

</mosaic_0001>

<llo_original>
// kernel: tpu_custom_call.1
$region0: #{tpu_custom_call.1}
  #allocation0 [shape = 'u32[]', space=smem, size = 0x4, offset = 0x4, fixed_abs, tag = 'smem constant byte address 0x4 - core index']
  #allocation1 [shape = 'u32[144,128]{1,0:T(1,128)}', space=vmem, size = 0x12000, scoped, tag = 'internal scratch']
  %s0 = inlined_call_operand.hbm [shape: f32[2,4,256], index: 0, kind: input, shape index: {}]
  %s1 = inlined_call_operand.vmem [shape: f32[1,4,1], index: 1, kind: output, shape index: {0}]
  %s2 = inlined_call_operand.vmem [shape: f32[1,4,1], index: 2, kind: output, shape index: {1}]
  %3 = xla_tuple %s1, %s2
  %s4 = sld [smem:[#allocation0]]
  $region30: #{tpu_custom_call.1} parent=0
    _
  %s6 = ssub.s32 1, %s4
  %s7 = scalar_select 0, %s6, %s4
  $region1: #{tpu_custom_call.1} parent=0
    #allocation2 [shape = 'u8[8192]{0}', space=vmem, size = 0x2000, scoped, tag = 'input window, operand 0, single buffered']
    #allocation3 [shape = 's32[1]{0}', space=sflag, size = 0x4, scoped, tag = 'scoped memory for tpu_custom_call.1']
    %8 = vsyncpa [#allocation3], 0
    // Predicated region
    $region2: #{tpu_custom_call.1} parent=1 // pred_check
      _
    $region3: #{tpu_custom_call.1} parent=1 // pred_check_branch
      %10 = sbr.rel (0) target = $region5
    $region4: #{tpu_custom_call.1} parent=1 // pred_region
      %s12 = ssub.s32 256, 256
      %13 = vsyncadd [#allocation3], %s12
      %s14 = sshll.u32 [#allocation2], 4
      %s15 = int_to_ptr.vmem [resolvable:$true] %s14
      %20 = dma.hbm_to_vmem [thread:$0]  %s0, 256, %s15, [#allocation3], 128, 128, 8
    $region5: #{tpu_custom_call.1} parent=1 // pred_fallthru
      _
    // Predicated region
    $region6: #{tpu_custom_call.1} parent=1 // pred_check
      _
    $region7: #{tpu_custom_call.1} parent=1 // pred_check_branch
      %22 = sbr.rel (0) target = $region9
    $region8: #{tpu_custom_call.1} parent=1 // pred_region
      %23 = dma.done [#allocation3], 256
    $region9: #{tpu_custom_call.1} parent=1 // pred_fallthru
      _
    %p24 = scmp.eq.s32.totalorder 0, 0
    // Predicated region
    $region10: #{tpu_custom_call.1} parent=1 // pred_check
      %p25 = pneg %p24
    $region11: #{tpu_custom_call.1} parent=1 // pred_check_branch
      %27 = sbr.rel (%p25) target = $region13
    $region12: #{tpu_custom_call.1} parent=1 // pred_region
      %vm28 = vcmask 3072
      %29 = vst.msk [vmem:[%s1] sm:$0xf] %vm28, 0.0
      %30 = vst.msk [vmem:[%s2] sm:$0xf] %vm28, 0.0
    $region13: #{tpu_custom_call.1} parent=1 // pred_fallthru
      _
    %v31 = vld [vmem:[#allocation2] sm:$0xff]
    %v32 = vld [vmem:[#allocation2 + $0x8] sm:$0xff]
    %v35 = vcombine.high %v31, %v31
    %v36 = vcombine.high %v32, %v32
    %vm39 = vcmask 1043456
    %v40 = vsel %vm39, %v31, 0.0
    %v41 = vsel %vm39, %v35, 0.0
    %v42 = vadd.f32 %v40, %v41
    %43 = vadd.xlane.f32.xlu0 %v42
    %v44 = vpop.xlane.xlu0 %43
    %v45 = vsel %vm39, %v32, 0.0
    %v46 = vsel %vm39, %v36, 0.0
    %v47 = vadd.f32 %v45, %v46
    %48 = vadd.xlane.f32.xlu0 %v47
    %v49 = vpop.xlane.xlu0 %48
    %v50 = vmul.f32 %v31, %v31
    %v51 = vmul.f32 %v32, %v32
    %v54 = vcombine.high %v50, %v50
    %v55 = vcombine.high %v51, %v51
    %v58 = vsel %vm39, %v50, 0.0
    %v59 = vsel %vm39, %v54, 0.0
    %v60 = vadd.f32 %v58, %v59
    %61 = vadd.xlane.f32.xlu0 %v60
    %v62 = vpop.xlane.xlu0 %61
    %v63 = vsel %vm39, %v51, 0.0
    %v64 = vsel %vm39, %v55, 0.0
    %v65 = vadd.f32 %v63, %v64
    %66 = vadd.xlane.f32.xlu0 %v65
    %v67 = vpop.xlane.xlu0 %66
    %v68 = vld [vmem:[%s1] sm:$0xf]
    %v69 = vsel %vm39, %v44, 0.0
    %v70 = vsel %vm39, %v49, 0.0
    %v71 = vadd.f32 %v69, %v70
    %v72 = vadd.f32 %v68, %v71
    %vm73 = vcmask 3072
    %74 = vst.msk [vmem:[%s1] sm:$0xf] %vm73, %v72
    %v75 = vld [vmem:[%s2] sm:$0xf]
    %v76 = vsel %vm39, %v62, 0.0
    %v77 = vsel %vm39, %v67, 0.0
    %v78 = vadd.f32 %v76, %v77
    %v79 = vadd.f32 %v75, %v78
    %80 = vst.msk [vmem:[%s2] sm:$0xf] %vm73, %v79
    // Predicated region
    $region14: #{tpu_custom_call.1} parent=1 // pred_check
      _
    $region15: #{tpu_custom_call.1} parent=1 // pred_check_branch
      %82 = sbr.rel (0) target = $region17
    $region16: #{tpu_custom_call.1} parent=1 // pred_region
      _
    $region17: #{tpu_custom_call.1} parent=1 // pred_fallthru
      _
    // Predicated region
    $region18: #{tpu_custom_call.1} parent=1 // pred_check
      _
    $region19: #{tpu_custom_call.1} parent=1 // pred_check_branch
      %84 = sbr.rel (0) target = $region21
    $region20: #{tpu_custom_call.1} parent=1 // pred_region
      _
    $region21: #{tpu_custom_call.1} parent=1 // pred_fallthru
      _
    // Predicated region
    $region22: #{tpu_custom_call.1} parent=1 // pred_check
      _
    $region23: #{tpu_custom_call.1} parent=1 // pred_check_branch
      %86 = sbr.rel (0) target = $region25
    $region24: #{tpu_custom_call.1} parent=1 // pred_region
      _
    $region25: #{tpu_custom_call.1} parent=1 // pred_fallthru
      _
    // Predicated region
    $region26: #{tpu_custom_call.1} parent=1 // pred_check
      _
    $region27: #{tpu_custom_call.1} parent=1 // pred_check_branch
      %88 = sbr.rel (0) target = $region29
    $region28: #{tpu_custom_call.1} parent=1 // pred_region
      _
    $region29: #{tpu_custom_call.1} parent=1 // pred_fallthru
      _
    %89 = vsyncpa [#allocation3], 1

</llo_original>
